<compile_context>
chip_gen: v7x
topology: tpu7x:2x2x1
jax: 0.10.0
libtpu: 0.0.40
codegen_flags: <defaults>
</compile_context>

<pallas_src>
import jax
import jax.numpy as jnp
from jax.experimental import pallas as pl
from jax.experimental.pallas import tpu as pltpu


def _round_up(v, m):
    return -(-v // m) * m


def _cdiv(a, b):
    return -(-a // b)


def _vmem_capacity_bytes():
    try:
        info = pltpu.get_tpu_info()
        cap = int(getattr(info, "vmem_capacity_bytes", 0))
        if cap > 0:
            return cap
    except Exception:
        pass
    return 64 * 1024 * 1024  # conservative fallback (v7x per-core physical VMEM)


def _patch_merging_kernel(x_ref, we_ref, wo_ref, b_ref, o_ref):
    # x_ref : (bh, 2, bw, 2C)  dim 1 = h parity
    #         even (h even) lanes = [x0 | x2], odd (h odd) lanes = [x1 | x3]
    # we_ref: (2C, Nout)  gamma-folded weight rows ordered [x0 | x2]
    # wo_ref: (2C, Nout)  gamma-folded weight rows ordered [x1 | x3]
    # b_ref : (1, Nout)   beta @ weight.T
    # o_ref : (bh, bw, Nout)
    even = x_ref[:, 0, :, :].astype(jnp.float32)        # (bh, bw, 2C)
    odd = x_ref[:, 1, :, :].astype(jnp.float32)         # (bh, bw, 2C)

    n = even.shape[-1] + odd.shape[-1]                  # 4C
    inv_n = 1.0 / n
    # Two-pass LayerNorm statistics in f32 (robust for real activation ranges).
    mean = (jnp.sum(even, axis=-1, keepdims=True)
            + jnp.sum(odd, axis=-1, keepdims=True)) * inv_n
    de = even - mean
    do = odd - mean
    var = (jnp.sum(de * de, axis=-1, keepdims=True)
           + jnp.sum(do * do, axis=-1, keepdims=True)) * inv_n
    inv = jax.lax.rsqrt(var + 1e-5)                     # torch LayerNorm eps

    ne = (de * inv).astype(we_ref.dtype)
    no = (do * inv).astype(wo_ref.dtype)

    bh, bw, c2 = ne.shape
    # Layout-trivial flatten: wrapper guarantees bw % 8 == 0 or bh == 1.
    ne2 = ne.reshape(bh * bw, c2)
    no2 = no.reshape(bh * bw, c2)

    acc = jnp.dot(ne2, we_ref[...], preferred_element_type=jnp.float32)
    acc = acc + jnp.dot(no2, wo_ref[...], preferred_element_type=jnp.float32)
    acc = acc + b_ref[...].astype(jnp.float32)          # (1, Nout) broadcast
    o_ref[...] = acc.reshape(o_ref.shape).astype(o_ref.dtype)


def patch_merging(x, input_resolution, gamma, beta, weight, *, block_tokens=None):
    """SwinIR PatchMerging forward.

    x: (B, H*W, C); gamma/beta: (4C,); weight: (2C, 4C) [torch nn.Linear layout].
    Returns (B, H*W/4, 2C).
    """
    H, W = input_resolution
    B, L, C = x.shape
    assert L == H * W, "input feature has wrong size"
    assert H % 2 == 0 and W % 2 == 0, f"x size ({H}*{W}) are not even."
    Hh, Wh = H // 2, W // 2
    C2 = 2 * C
    Nout = 2 * C
    R = B * Hh

    # Free view: (B, H*W, C) -> (B*H/2, 2[h parity], W/2, 2C[(w parity, c)]).
    x4 = x.reshape(R, 2, Wh, C2)

    # ---- Fold LayerNorm affine into the linear; split rows per h-parity ----
    wT = weight.astype(jnp.float32).T                      # (4C, Nout), rows [x0,x1,x2,x3]
    wf = gamma.astype(jnp.float32)[:, None] * wT           # gamma folded in
    bias = beta.astype(jnp.float32) @ wT                   # (Nout,)
    w_even = jnp.concatenate([wf[0:C], wf[2 * C:3 * C]], axis=0).astype(weight.dtype)   # [x0|x2]
    w_odd = jnp.concatenate([wf[C:2 * C], wf[3 * C:4 * C]], axis=0).astype(weight.dtype)  # [x1|x3]
    bias2d = bias.reshape(1, Nout)

    # ---- Generation-aware VMEM budget & tile sizing ----
    vmem_cap = _vmem_capacity_bytes()
    budget = int(0.60 * vmem_cap)
    if block_tokens is None:
        block_tokens = 4096 if vmem_cap > (96 << 20) else 2048   # v5e/v6e vs v7x

    x_item = jnp.dtype(x.dtype).itemsize
    w_item = jnp.dtype(weight.dtype).itemsize
    lane_c2 = _round_up(C2, 128)
    lane_n = _round_up(Nout, 128)

    # Constant operands (two weight halves + bias), double-buffered by the pipeline.
    # (They never re-DMA; pipeline_mode=pl.Buffered(1) would shave a bit of VMEM.)
    fixed = 2 * (2 * _round_up(C2, 8) * lane_n * w_item + 8 * lane_n * 4)
    # Bytes per merged token: double-buffered x/out blocks + f32 temporaries + f32 acc.
    per_tok = (2 * (2 * lane_c2 * x_item)      # x block (even+odd rows), x2 buffers
               + 2 * (lane_n * x_item)         # out block, x2 buffers
               + 4 * lane_c2 * 4               # f32 even/odd/centered/normalized
               + lane_n * 4)                   # f32 accumulator
    max_tokens = max(8, (budget - fixed) // per_tok)
    tokens = int(max(8, min(block_tokens, max_tokens)))

    # Choose (bh, bw): bw a multiple of 8 (or the full Wh) keeps the in-kernel
    # (bh, bw, 2C) -> (bh*bw, 2C) flatten layout-trivial.
    if Wh % 8 == 0:
        if Wh <= tokens:
            bw = Wh
            bh = max(1, min(R, tokens // Wh))
        else:                                   # W tiling for large resolutions
            bw = max(8, (tokens // 8) * 8)
            bh = 1
    else:
        bh = 1                                  # keep the flatten trivial
        bw = Wh if Wh <= tokens else max(8, (tokens // 8) * 8)

    # Even, near-equal split of R across blocks (keeps both v7x TCs busy).
    if R >= 2:
        nR_target = max(2, 2 * _cdiv(R, 2 * bh))
        bh = _cdiv(R, nR_target)
    nR = _cdiv(R, bh)
    nW = _cdiv(Wh, bw)

    # VMEM estimate for the chosen block (drives vmem_limit_bytes).
    sub_bw = _round_up(bw, 8)
    vmem_est = (fixed
                + 2 * bh * 2 * sub_bw * lane_c2 * x_item
                + 2 * bh * sub_bw * lane_n * x_item
                + 4 * bh * sub_bw * lane_c2 * 4
                + bh * sub_bw * lane_n * 4)
    vmem_limit = int(min(0.9 * vmem_cap, max(2 * vmem_est, 16 << 20)))

    out = pl.pallas_call(
        _patch_merging_kernel,
        out_shape=jax.ShapeDtypeStruct((R, Wh, Nout), x.dtype),
        grid_spec=pltpu.PrefetchScalarGridSpec(
            num_scalar_prefetch=0,
            grid=(nR, nW),
            in_specs=[
                pl.BlockSpec((bh, 2, bw, C2), lambda r, w: (r, 0, w, 0)),
                pl.BlockSpec((C2, Nout), lambda r, w: (0, 0)),
                pl.BlockSpec((C2, Nout), lambda r, w: (0, 0)),
                pl.BlockSpec((1, Nout), lambda r, w: (0, 0)),
            ],
            out_specs=pl.BlockSpec((bh, bw, Nout), lambda r, w: (r, w, 0)),
        ),
        compiler_params=pltpu.CompilerParams(
            dimension_semantics=("parallel", "parallel"),
            vmem_limit_bytes=vmem_limit,
        ),
    )(x4, w_even, w_odd, bias2d)

    # Free reshape (metadata only): (R, Wh, 2C) -> (B, H*W/4, 2C). No un-pad pass.
    return out.reshape(B, Hh * Wh, Nout)


def _reference(x, input_resolution, gamma, beta, weight):
    """Pure-JAX reference mirroring the PyTorch forward."""
    H, W = input_resolution
    B, L, C = x.shape
    xv = x.reshape(B, H, W, C)
    x0 = xv[:, 0::2, 0::2, :]
    x1 = xv[:, 1::2, 0::2, :]
    x2 = xv[:, 0::2, 1::2, :]
    x3 = xv[:, 1::2, 1::2, :]
    xm = jnp.concatenate([x0, x1, x2, x3], axis=-1).reshape(B, -1, 4 * C)
    mean = jnp.mean(xm, axis=-1, keepdims=True)
    var = jnp.mean((xm - mean) ** 2, axis=-1, keepdims=True)
    y = (xm - mean) / jnp.sqrt(var + 1e-5) * gamma + beta
    return jnp.dot(y, weight.T, precision=jax.lax.Precision.HIGHEST)


if __name__ == "__main__":
    def run_case(B, C, H, W, block_tokens=None):
        key = jax.random.PRNGKey(0)
        kx, kw, kg, kb = jax.random.split(key, 4)
        x = jax.random.normal(kx, (B, H * W, C), dtype=jnp.float32)
        weight = jax.random.normal(kw, (2 * C, 4 * C), dtype=jnp.float32) * 0.02
        gamma = 1.0 + 0.1 * jax.random.normal(kg, (4 * C,), dtype=jnp.float32)
        beta = 0.1 * jax.random.normal(kb, (4 * C,), dtype=jnp.float32)

        out = patch_merging(x, (H, W), gamma, beta, weight, block_tokens=block_tokens)
        out = jax.block_until_ready(out)
        ref = _reference(x, (H, W), gamma, beta, weight)

        assert out.shape == (B, H * W // 4, 2 * C), out.shape
        err = jnp.max(jnp.abs(out - ref))
        assert jnp.allclose(out, ref, atol=5e-4, rtol=5e-4), f"max abs err {err}"

    # Small shapes consistent with the module: B=2, dim=4, 16x16 -> L=256.
    run_case(2, 4, 16, 16)
    # SwinIR-like channel count (dim=60): exercises the masked-store (Nout=120) path.
    run_case(1, 60, 8, 8)
    # Force the W-tiling path (second grid axis) with a tiny token budget.
    run_case(1, 8, 16, 64, block_tokens=16)

    print("KERNEL_OK")
</pallas_src>

<mosaic_0001>
module attributes {stable_mosaic.version = 11 : i64} {
  func.func @_patch_merging_kernel(%arg0: i32, %arg1: i32, %arg2: memref<8x2x8x8xf32, #tpu.memory_space<vmem>>, %arg3: memref<8x8xf32, #tpu.memory_space<vmem>>, %arg4: memref<8x8xf32, #tpu.memory_space<vmem>>, %arg5: memref<1x8xf32, #tpu.memory_space<vmem>>, %arg6: memref<8x8x8xf32, #tpu.memory_space<vmem>>) attributes {dimension_semantics = [#tpu.dimension_semantics<parallel>, #tpu.dimension_semantics<parallel>], iteration_bounds = array<i64: 2, 1>, scalar_prefetch = 0 : i64, scratch_operands = 0 : i64, tpu.core_type = #tpu.core_type<tc>, window_params = [{transform_indices = @transform_0, window_bounds = array<i64: 8, 2, 8, 8>}, {pipeline_mode = #tpu.pipeline_mode<synchronous>, transform_indices = @transform_1, window_bounds = array<i64: 8, 8>}, {pipeline_mode = #tpu.pipeline_mode<synchronous>, transform_indices = @transform_2, window_bounds = array<i64: 8, 8>}, {pipeline_mode = #tpu.pipeline_mode<synchronous>, transform_indices = @transform_3, window_bounds = array<i64: 1, 8>}, {transform_indices = @transform_4, window_bounds = array<i64: 8, 8, 8>}]} {
    %c0 = arith.constant 0 : index
    %c0_0 = arith.constant 0 : index
    %c0_1 = arith.constant 0 : index
    %c0_2 = arith.constant 0 : index
    %0 = vector.load %arg2[%c0, %c0_0, %c0_1, %c0_2] : memref<8x2x8x8xf32, #tpu.memory_space<vmem>>, vector<8x1x8x8xf32>
    %1 = vector.shape_cast %0 : vector<8x1x8x8xf32> to vector<8x8x8xf32>
    %c0_3 = arith.constant 0 : index
    %c1 = arith.constant 1 : index
    %c0_4 = arith.constant 0 : index
    %c0_5 = arith.constant 0 : index
    %2 = vector.load %arg2[%c0_3, %c1, %c0_4, %c0_5] : memref<8x2x8x8xf32, #tpu.memory_space<vmem>>, vector<8x1x8x8xf32>
    %3 = vector.shape_cast %2 : vector<8x1x8x8xf32> to vector<8x8x8xf32>
    %cst = arith.constant dense<0.000000e+00> : vector<8x8xf32>
    %4 = vector.multi_reduction <add>, %1, %cst [2] : vector<8x8x8xf32> to vector<8x8xf32>
    %5 = vector.shape_cast %4 : vector<8x8xf32> to vector<8x8x1xf32>
    %cst_6 = arith.constant dense<0.000000e+00> : vector<8x8xf32>
    %6 = vector.multi_reduction <add>, %3, %cst_6 [2] : vector<8x8x8xf32> to vector<8x8xf32>
    %7 = vector.shape_cast %6 : vector<8x8xf32> to vector<8x8x1xf32>
    %8 = arith.addf %5, %7 : vector<8x8x1xf32>
    %cst_7 = arith.constant 6.250000e-02 : f32
    %9 = vector.broadcast %cst_7 : f32 to vector<8x8x1xf32>
    %10 = arith.mulf %8, %9 : vector<8x8x1xf32>
    %11 = vector.broadcast %10 : vector<8x8x1xf32> to vector<8x8x8xf32>
    %12 = arith.subf %1, %11 : vector<8x8x8xf32>
    %13 = vector.broadcast %10 : vector<8x8x1xf32> to vector<8x8x8xf32>
    %14 = arith.subf %3, %13 : vector<8x8x8xf32>
    %15 = arith.mulf %12, %12 : vector<8x8x8xf32>
    %cst_8 = arith.constant dense<0.000000e+00> : vector<8x8xf32>
    %16 = vector.multi_reduction <add>, %15, %cst_8 [2] : vector<8x8x8xf32> to vector<8x8xf32>
    %17 = vector.shape_cast %16 : vector<8x8xf32> to vector<8x8x1xf32>
    %18 = arith.mulf %14, %14 : vector<8x8x8xf32>
    %cst_9 = arith.constant dense<0.000000e+00> : vector<8x8xf32>
    %19 = vector.multi_reduction <add>, %18, %cst_9 [2] : vector<8x8x8xf32> to vector<8x8xf32>
    %20 = vector.shape_cast %19 : vector<8x8xf32> to vector<8x8x1xf32>
    %21 = arith.addf %17, %20 : vector<8x8x1xf32>
    %cst_10 = arith.constant 6.250000e-02 : f32
    %22 = vector.broadcast %cst_10 : f32 to vector<8x8x1xf32>
    %23 = arith.mulf %21, %22 : vector<8x8x1xf32>
    %cst_11 = arith.constant 9.99999974E-6 : f32
    %24 = vector.broadcast %cst_11 : f32 to vector<8x8x1xf32>
    %25 = arith.addf %23, %24 : vector<8x8x1xf32>
    %26 = math.rsqrt %25 : vector<8x8x1xf32>
    %27 = vector.broadcast %26 : vector<8x8x1xf32> to vector<8x8x8xf32>
    %28 = arith.mulf %12, %27 : vector<8x8x8xf32>
    %29 = vector.broadcast %26 : vector<8x8x1xf32> to vector<8x8x8xf32>
    %30 = arith.mulf %14, %29 : vector<8x8x8xf32>
    %31 = vector.shape_cast %28 : vector<8x8x8xf32> to vector<64x8xf32>
    %32 = vector.shape_cast %30 : vector<8x8x8xf32> to vector<64x8xf32>
    %c0_12 = arith.constant 0 : index
    %c0_13 = arith.constant 0 : index
    %33 = vector.load %arg3[%c0_12, %c0_13] : memref<8x8xf32, #tpu.memory_space<vmem>>, vector<8x8xf32>
    %cst_14 = arith.constant dense<0.000000e+00> : vector<64x8xf32>
    %34 = tpu.matmul %31, %33, %cst_14 {dimension_numbers = #tpu.dot_dimension_numbers<[1], [0], [0], [1], [0, 0, 1, 1], [], []>} : vector<64x8xf32>, vector<8x8xf32>, vector<64x8xf32> -> vector<64x8xf32>
    %c0_15 = arith.constant 0 : index
    %c0_16 = arith.constant 0 : index
    %35 = vector.load %arg4[%c0_15, %c0_16] : memref<8x8xf32, #tpu.memory_space<vmem>>, vector<8x8xf32>
    %cst_17 = arith.constant dense<0.000000e+00> : vector<64x8xf32>
    %36 = tpu.matmul %32, %35, %cst_17 {dimension_numbers = #tpu.dot_dimension_numbers<[1], [0], [0], [1], [0, 0, 1, 1], [], []>} : vector<64x8xf32>, vector<8x8xf32>, vector<64x8xf32> -> vector<64x8xf32>
    %37 = arith.addf %34, %36 : vector<64x8xf32>
    %c0_18 = arith.constant 0 : index
    %c0_19 = arith.constant 0 : index
    %38 = vector.load %arg5[%c0_18, %c0_19] : memref<1x8xf32, #tpu.memory_space<vmem>>, vector<1x8xf32>
    %39 = vector.broadcast %38 : vector<1x8xf32> to vector<64x8xf32>
    %40 = arith.addf %37, %39 : vector<64x8xf32>
    %41 = vector.shape_cast %40 : vector<64x8xf32> to vector<8x8x8xf32>
    %c0_20 = arith.constant 0 : index
    %c0_21 = arith.constant 0 : index
    %c0_22 = arith.constant 0 : index
    %42 = vector.load %arg6[%c0_20, %c0_21, %c0_22] : memref<8x8x8xf32, #tpu.memory_space<vmem>>, vector<8x8x8xf32>
    tpu.vector_store %arg6[%c0_20, %c0_21, %c0_22], %41 {strides = array<i32>} : memref<8x8x8xf32, #tpu.memory_space<vmem>>, vector<8x8x8xf32>,
    return
  }
  func.func @transform_0(%arg0: i32, %arg1: i32) -> (i32, i32, i32, i32) {
    %c0_i32 = arith.constant 0 : i32
    %c0_i32_0 = arith.constant 0 : i32
    %c0_i32_1 = arith.constant 0 : i32
    return %arg0, %c0_i32, %arg1, %c0_i32_0 : i32, i32, i32, i32
  }
  func.func @transform_1(%arg0: i32, %arg1: i32) -> (i32, i32) {
    %c0_i32 = arith.constant 0 : i32
    %c0_i32_0 = arith.constant 0 : i32
    %c0_i32_1 = arith.constant 0 : i32
    return %c0_i32, %c0_i32_0 : i32, i32
  }
  func.func @transform_2(%arg0: i32, %arg1: i32) -> (i32, i32) {
    %c0_i32 = arith.constant 0 : i32
    %c0_i32_0 = arith.constant 0 : i32
    %c0_i32_1 = arith.constant 0 : i32
    return %c0_i32, %c0_i32_0 : i32, i32
  }
  func.func @transform_3(%arg0: i32, %arg1: i32) -> (i32, i32) {
    %c0_i32 = arith.constant 0 : i32
    %c0_i32_0 = arith.constant 0 : i32
    %c0_i32_1 = arith.constant 0 : i32
    return %c0_i32, %c0_i32_0 : i32, i32
  }
  func.func @transform_4(%arg0: i32, %arg1: i32) -> (i32, i32, i32) {
    %c0_i32 = arith.constant 0 : i32
    %c0_i32_0 = arith.constant 0 : i32
    return %arg0, %arg1, %c0_i32 : i32, i32, i32
  }
}

</mosaic_0001>

<llo_original>
// kernel: tpu_custom_call.1
$region0: #{tpu_custom_call.1}
  #allocation0 [shape = 'u32[]', space=smem, size = 0x4, offset = 0x4, fixed_abs, tag = 'smem constant byte address 0x4 - core index']
  #allocation1 [shape = 'u32[144,128]{1,0:T(1,128)}', space=vmem, size = 0x12000, scoped, tag = 'internal scratch']
  %s0 = inlined_call_operand.vmem [shape: f32[16,2,8,8], index: 0, kind: input, shape index: {}]
  %s1 = inlined_call_operand.vmem [shape: f32[8,8], index: 1, kind: input, shape index: {}]
  %s2 = inlined_call_operand.vmem [shape: f32[8,8], index: 2, kind: input, shape index: {}]
  %s3 = inlined_call_operand.vmem [shape: f32[1,8], index: 3, kind: input, shape index: {}]
  %s4 = inlined_call_operand.vmem [shape: f32[16,8,8], index: 4, kind: output, shape index: {}]
  %s5 = sld [smem:[#allocation0]]
  $region49: #{tpu_custom_call.1} parent=0
    _
  %s7 = ssub.s32 1, %s5
  %s8 = scalar_select 0, %s7, %s5
  loop: start=0, step=1, limit=4
  $region2: #{tpu_custom_call.1} parent=0 // loop_pre_header
    _
  $region3: #{tpu_custom_call.1} parent=0 // loop_header
    %s10 = sphi 0, %s14
    %p11 = scmp.ge.s32.totalorder %s10, 4
    %s17 = sphi 0, %s29
    %s18 = sphi 0, %s25
    %s19 = sphi 0, %s17
    %s20 = sphi 0, %s18
    %s21 = sphi 0, %s19
    %s22 = sphi 0, %s20
    %s34 = sphi 0, %s36
    %s37 = sphi 0, %s34
    %s38 = sphi 0, %s37
    %s54 = sphi 0, %s38
    %s58 = sphi 0, %s58
    %s60 = sphi 0, %s58
    %s61 = sphi 0, %s60
    %s75 = sphi 0, %s61
    %s79 = sphi 0, %s79
    %s81 = sphi 0, %s79
    %s82 = sphi 0, %s81
    %s96 = sphi 0, %s82
    %s100 = sphi 0, %s100
    %s102 = sphi 0, %s100
    %s103 = sphi 0, %s102
    %s117 = sphi 0, %s103
    %s125 = sphi 0, %s127
    %s128 = sphi 0, %s125
    %s129 = sphi 0, %s128
    %s145 = sphi 0, %s129
  $region4: #{tpu_custom_call.1} parent=0 // loop_header_branch
    %13 = sbr.rel (%p11) target = $region8
  $region5: #{tpu_custom_call.1} parent=0 // loop_body
    %s15 = ssub.s32 %s10, 1
    %s16 = ssub.s32 %s10, 2
    %s23 = sadd.s32 1, %s18
    %p24 = scmp.ge.s32.totalorder %s23, 1
    %s25 = scalar_select %p24, 0, %s23
    %s26 = sadd.s32 1, %s17
    %s27 = scalar_select %p24, %s26, %s17
    %p28 = scmp.ge.s32.totalorder %s27, 2
    %s29 = scalar_select %p28, 0, %s27
    %s30 = ssub.s32 %s17, %s29
    %s31 = ssub.s32 %s18, %s25
    %s32 = sor.u32 %s30, %s31
    %p33 = scmp.eq.s32.totalorder %s32, 0
    %s35 = sadd.s32 %s34, 1
    %s36 = scalar_select %p33, %s34, %s35
    %p39 = pneg %p33
    %p40 = scmp.eq.s32.totalorder %s10, 1
    %p41 = por %p39, %p40
    %p42 = scmp.ne.s32.totalorder %s34, %s37
    %p43 = scmp.eq.s32.totalorder %s10, 0
    %p44 = por %p42, %p43
    %p45 = scmp.ne.s32.totalorder %s34, %s37
    %p46 = scmp.eq.s32.totalorder %s15, 1
    %p47 = por %p45, %p46
    %p48 = scmp.ne.s32.totalorder %s37, %s38
    %p49 = scmp.eq.s32.totalorder %s15, 0
    %p50 = por %p48, %p49
    %p51 = scmp.ne.s32.totalorder %s37, %s38
    %p52 = scmp.eq.s32.totalorder %s16, 1
    %p53 = por %p51, %p52
    %p55 = scmp.ne.s32.totalorder %s38, %s54
    %p56 = scmp.eq.s32.totalorder %s16, 0
    %p57 = por %p55, %p56
    %s59 = sadd.s32 %s58, 1
    %p62 = scmp.eq.s32.totalorder %s10, 1
    %p63 = scmp.ne.s32.totalorder %s58, %s60
    %p64 = scmp.eq.s32.totalorder %s10, 0
    %p65 = por %p63, %p64
    %p66 = scmp.ne.s32.totalorder %s58, %s60
    %p67 = scmp.eq.s32.totalorder %s15, 1
    %p68 = por %p66, %p67
    %p69 = scmp.ne.s32.totalorder %s60, %s61
    %p70 = scmp.eq.s32.totalorder %s15, 0
    %p71 = por %p69, %p70
    %p72 = scmp.ne.s32.totalorder %s60, %s61
    %p73 = scmp.eq.s32.totalorder %s16, 1
    %p74 = por %p72, %p73
    %p76 = scmp.ne.s32.totalorder %s61, %s75
    %p77 = scmp.eq.s32.totalorder %s16, 0
    %p78 = por %p76, %p77
    %s80 = sadd.s32 %s79, 1
    %p83 = scmp.eq.s32.totalorder %s10, 1
    %p84 = scmp.ne.s32.totalorder %s79, %s81
    %p85 = scmp.eq.s32.totalorder %s10, 0
    %p86 = por %p84, %p85
    %p87 = scmp.ne.s32.totalorder %s79, %s81
    %p88 = scmp.eq.s32.totalorder %s15, 1
    %p89 = por %p87, %p88
    %p90 = scmp.ne.s32.totalorder %s81, %s82
    %p91 = scmp.eq.s32.totalorder %s15, 0
    %p92 = por %p90, %p91
    %p93 = scmp.ne.s32.totalorder %s81, %s82
    %p94 = scmp.eq.s32.totalorder %s16, 1
    %p95 = por %p93, %p94
    %p97 = scmp.ne.s32.totalorder %s82, %s96
    %p98 = scmp.eq.s32.totalorder %s16, 0
    %p99 = por %p97, %p98
    %s101 = sadd.s32 %s100, 1
    %p104 = scmp.eq.s32.totalorder %s10, 1
    %p105 = scmp.ne.s32.totalorder %s100, %s102
    %p106 = scmp.eq.s32.totalorder %s10, 0
    %p107 = por %p105, %p106
    %p108 = scmp.ne.s32.totalorder %s100, %s102
    %p109 = scmp.eq.s32.totalorder %s15, 1
    %p110 = por %p108, %p109
    %p111 = scmp.ne.s32.totalorder %s102, %s103
    %p112 = scmp.eq.s32.totalorder %s15, 0
    %p113 = por %p111, %p112
    %p114 = scmp.ne.s32.totalorder %s102, %s103
    %p115 = scmp.eq.s32.totalorder %s16, 1
    %p116 = por %p114, %p115
    %p118 = scmp.ne.s32.totalorder %s103, %s117
    %p119 = scmp.eq.s32.totalorder %s16, 0
    %p120 = por %p118, %p119
    %s121 = ssub.s32 %s17, %s29
    %s122 = ssub.s32 %s18, %s25
    %s123 = sor.u32 %s121, %s122
    %p124 = scmp.eq.s32.totalorder %s123, 0
    %s126 = sadd.s32 %s125, 1
    %s127 = scalar_select %p124, %s125, %s126
    %p130 = pneg %p124
    %p131 = scmp.eq.s32.totalorder %s10, 1
    %p132 = por %p130, %p131
    %p133 = scmp.ne.s32.totalorder %s125, %s128
    %p134 = scmp.eq.s32.totalorder %s10, 0
    %p135 = por %p133, %p134
    %p136 = scmp.ne.s32.totalorder %s125, %s128
    %p137 = scmp.eq.s32.totalorder %s15, 1
    %p138 = por %p136, %p137
    %p139 = scmp.ne.s32.totalorder %s128, %s129
    %p140 = scmp.eq.s32.totalorder %s15, 0
    %p141 = por %p139, %p140
    %p142 = scmp.ne.s32.totalorder %s128, %s129
    %p143 = scmp.eq.s32.totalorder %s16, 1
    %p144 = por %p142, %p143
    %p146 = scmp.ne.s32.totalorder %s129, %s145
    %p147 = scmp.eq.s32.totalorder %s16, 0
    %p148 = por %p146, %p147
    %p149 = scmp.le.s32.totalorder 1, %s10
    %p150 = scmp.lt.s32.totalorder %s10, 3
    %p151 = pnand %p149, %p150
    %p152 = pneg %p151
    // Predicated region
    $region9: #{tpu_custom_call.1} parent=5 // pred_check
      _
    $region10: #{tpu_custom_call.1} parent=5 // pred_check_branch
      %154 = sbr.rel (%p151) target = $region12
    $region11: #{tpu_custom_call.1} parent=5 // pred_region
      %s155 = ssub.s32 %s10, 1
      // Predicated region
      $region13: #{tpu_custom_call.1} parent=11 // pred_check
        %p156 = pneg %p71
      $region14: #{tpu_custom_call.1} parent=11 // pred_check_branch
        %158 = sbr.rel (%p156) target = $region16
      $region15: #{tpu_custom_call.1} parent=11 // pred_region
        _
      $region16: #{tpu_custom_call.1} parent=11 // pred_fallthru
        _
      // Predicated region
      $region17: #{tpu_custom_call.1} parent=11 // pred_check
        %p159 = pneg %p92
      $region18: #{tpu_custom_call.1} parent=11 // pred_check_branch
        %161 = sbr.rel (%p159) target = $region20
      $region19: #{tpu_custom_call.1} parent=11 // pred_region
        _
      $region20: #{tpu_custom_call.1} parent=11 // pred_fallthru
        _
      // Predicated region
      $region21: #{tpu_custom_call.1} parent=11 // pred_check
        %p162 = pneg %p113
      $region22: #{tpu_custom_call.1} parent=11 // pred_check_branch
        %164 = sbr.rel (%p162) target = $region24
      $region23: #{tpu_custom_call.1} parent=11 // pred_region
        _
      $region24: #{tpu_custom_call.1} parent=11 // pred_fallthru
        _
    $region12: #{tpu_custom_call.1} parent=5 // pred_fallthru
      _
    %p165 = scmp.lt.s32.totalorder %s10, 2
    // Predicated region
    $region25: #{tpu_custom_call.1} parent=5 // pred_check
      %p166 = pneg %p165
    $region26: #{tpu_custom_call.1} parent=5 // pred_check_branch
      %168 = sbr.rel (%p166) target = $region28
    $region27: #{tpu_custom_call.1} parent=5 // pred_region
      // Predicated region
      $region29: #{tpu_custom_call.1} parent=27 // pred_check
        %p169 = pneg %p44
      $region30: #{tpu_custom_call.1} parent=27 // pred_check_branch
        %171 = sbr.rel (%p169) target = $region32
      $region31: #{tpu_custom_call.1} parent=27 // pred_region
        %s172 = smul.u32 8, %s17
        %p173 = scmp.lt.s32.totalorder %s172, 15
        %s174 = scalar_select %p173, %s172, 15
        %p175 = scmp.lt.s32.totalorder %s18, 0
        %s176 = scalar_select %p175, %s18, 0
        %s177 = smul.addr %s174, 2
        %s178 = sadd.s32 %s176, %s177
        %s179 = smul.addr %s178, 8
        %s180 = scalar_lea.vmem %s0, %s179
        %s181 = smul.u32 8, %s17
      $region32: #{tpu_custom_call.1} parent=27 // pred_fallthru
        _
    $region28: #{tpu_custom_call.1} parent=5 // pred_fallthru
      _
    %p182 = scmp.le.s32.totalorder 1, %s10
    %p183 = scmp.lt.s32.totalorder %s10, 3
    %p184 = pnand %p182, %p183
    %p185 = pneg %p184
    // Predicated region
    $region33: #{tpu_custom_call.1} parent=5 // pred_check
      _
    $region34: #{tpu_custom_call.1} parent=5 // pred_check_branch
      %187 = sbr.rel (%p184) target = $region36
    $region35: #{tpu_custom_call.1} parent=5 // pred_region
      %s188 = ssub.s32 %s10, 1
      %s189 = smul.u32 8, %s19
      %p190 = scmp.lt.s32.totalorder %s189, 15
      %s191 = scalar_select %p190, %s189, 15
      %p192 = scmp.lt.s32.totalorder %s20, 0
      %s193 = scalar_select %p192, %s20, 0
      %s194 = smul.addr %s191, 2
      %s195 = sadd.s32 %s193, %s194
      %s196 = smul.addr %s195, 8
      %s197 = scalar_lea.vmem %s0, %s196
      %p198 = pneg %p50
      %p199 = pneg %p47
      %p200 = pneg %p71
      %p201 = pneg %p68
      %p202 = pneg %p92
      %p203 = pneg %p89
      %p204 = pneg %p113
      %p205 = pneg %p110
      %p206 = pneg %p141
      %p207 = pneg %p138
      %s208 = smul.u32 8, %s19
      %p209 = scmp.lt.s32.totalorder %s208, 15
      %s210 = scalar_select %p209, %s208, 15
      %p211 = scmp.lt.s32.totalorder %s20, 0
      %s212 = scalar_select %p211, %s20, 0
      %s213 = sadd.s32 %s212, %s210
      %s214 = smul.addr %s213, 8
      %s215 = scalar_lea.vmem %s4, %s214
      %s216 = smul.u32 8, %s19
      %p217 = scmp.lt.s32.totalorder %s216, 15
      %s218 = scalar_select %p217, %s216, 15
      %p219 = scmp.lt.s32.totalorder %s20, 0
      %s220 = scalar_select %p219, %s20, 0
      %s221 = smul.addr %s218, 2
      %s222 = sadd.s32 %s220, %s221
      %s223 = smul.addr %s222, 8
      %s224 = scalar_lea.vmem %s0, %s223
      %s225 = smul.u32 8, %s19
      %s226 = smul.u32 8, %s19
      %p227 = scmp.lt.s32.totalorder %s226, 15
      %s228 = scalar_select %p227, %s226, 15
      %p229 = scmp.lt.s32.totalorder %s20, 0
      %s230 = scalar_select %p229, %s20, 0
      %s231 = sadd.s32 %s230, %s228
      %s232 = smul.addr %s231, 8
      %s233 = scalar_lea.vmem %s4, %s232
      %s234 = smul.u32 8, %s19
      %v235 = vld [vmem:[%s224] sm:$0xff]
      %v236 = vld [vmem:[%s224 + $0x10] sm:$0xff]
      %v237 = vld [vmem:[%s224 + $0x20] sm:$0xff]
      %v238 = vld [vmem:[%s224 + $0x30] sm:$0xff]
      %v239 = vld [vmem:[%s224 + $0x40] sm:$0xff]
      %v240 = vld [vmem:[%s224 + $0x50] sm:$0xff]
      %v241 = vld [vmem:[%s224 + $0x60] sm:$0xff]
      %v242 = vld [vmem:[%s224 + $0x70] sm:$0xff]
      %s243 = scalar_lea.vmem %s224, 8
      %v244 = vld [vmem:[%s243] sm:$0xff]
      %v245 = vld [vmem:[%s243 + $0x10] sm:$0xff]
      %v246 = vld [vmem:[%s243 + $0x20] sm:$0xff]
      %v247 = vld [vmem:[%s243 + $0x30] sm:$0xff]
      %v248 = vld [vmem:[%s243 + $0x40] sm:$0xff]
      %v249 = vld [vmem:[%s243 + $0x50] sm:$0xff]
      %v250 = vld [vmem:[%s243 + $0x60] sm:$0xff]
      %v251 = vld [vmem:[%s243 + $0x70] sm:$0xff]
      %vm252 = vcmask 64512
      %v253 = vsel %vm252, %v235, 0.0
      %254 = vadd.xlane.f32.xlu0 %v253
      %v255 = vpop.xlane.xlu0 %254
      %v256 = vsel %vm252, %v236, 0.0
      %257 = vadd.xlane.f32.xlu0 %v256
      %v258 = vpop.xlane.xlu0 %257
      %v259 = vsel %vm252, %v237, 0.0
      %260 = vadd.xlane.f32.xlu0 %v259
      %v261 = vpop.xlane.xlu0 %260
      %v262 = vsel %vm252, %v238, 0.0
      %263 = vadd.xlane.f32.xlu0 %v262
      %v264 = vpop.xlane.xlu0 %263
      %v265 = vsel %vm252, %v239, 0.0
      %266 = vadd.xlane.f32.xlu0 %v265
      %v267 = vpop.xlane.xlu0 %266
      %v268 = vsel %vm252, %v240, 0.0
      %269 = vadd.xlane.f32.xlu0 %v268
      %v270 = vpop.xlane.xlu0 %269
      %v271 = vsel %vm252, %v241, 0.0
      %272 = vadd.xlane.f32.xlu0 %v271
      %v273 = vpop.xlane.xlu0 %272
      %v274 = vsel %vm252, %v242, 0.0
      %275 = vadd.xlane.f32.xlu0 %v274
      %v276 = vpop.xlane.xlu0 %275
      %v277 = vsel %vm252, %v244, 0.0
      %278 = vadd.xlane.f32.xlu0 %v277
      %v279 = vpop.xlane.xlu0 %278
      %v280 = vsel %vm252, %v245, 0.0
      %281 = vadd.xlane.f32.xlu0 %v280
      %v282 = vpop.xlane.xlu0 %281
      %v283 = vsel %vm252, %v246, 0.0
      %284 = vadd.xlane.f32.xlu0 %v283
      %v285 = vpop.xlane.xlu0 %284
      %v286 = vsel %vm252, %v247, 0.0
      %287 = vadd.xlane.f32.xlu0 %v286
      %v288 = vpop.xlane.xlu0 %287
      %v289 = vsel %vm252, %v248, 0.0
      %290 = vadd.xlane.f32.xlu0 %v289
      %v291 = vpop.xlane.xlu0 %290
      %v292 = vsel %vm252, %v249, 0.0
      %293 = vadd.xlane.f32.xlu0 %v292
      %v294 = vpop.xlane.xlu0 %293
      %v295 = vsel %vm252, %v250, 0.0
      %296 = vadd.xlane.f32.xlu0 %v295
      %v297 = vpop.xlane.xlu0 %296
      %v298 = vsel %vm252, %v251, 0.0
      %299 = vadd.xlane.f32.xlu0 %v298
      %v300 = vpop.xlane.xlu0 %299
      %v301 = vadd.f32 %v255, %v279
      %v302 = vadd.f32 %v258, %v282
      %v303 = vadd.f32 %v261, %v285
      %v304 = vadd.f32 %v264, %v288
      %v305 = vadd.f32 %v267, %v291
      %v306 = vadd.f32 %v270, %v294
      %v307 = vadd.f32 %v273, %v297
      %v308 = vadd.f32 %v276, %v300
      %v309 = vmul.f32 %v301, 0.0625
      %v310 = vmul.f32 %v302, 0.0625
      %v311 = vmul.f32 %v303, 0.0625
      %v312 = vmul.f32 %v304, 0.0625
      %v313 = vmul.f32 %v305, 0.0625
      %v314 = vmul.f32 %v306, 0.0625
      %v315 = vmul.f32 %v307, 0.0625
      %v316 = vmul.f32 %v308, 0.0625
      %v317 = vsub.f32 %v235, %v309
      %v318 = vsub.f32 %v236, %v310
      %v319 = vsub.f32 %v237, %v311
      %v320 = vsub.f32 %v238, %v312
      %v321 = vsub.f32 %v239, %v313
      %v322 = vsub.f32 %v240, %v314
      %v323 = vsub.f32 %v241, %v315
      %v324 = vsub.f32 %v242, %v316
      %v325 = vsub.f32 %v244, %v309
      %v326 = vsub.f32 %v245, %v310
      %v327 = vsub.f32 %v246, %v311
      %v328 = vsub.f32 %v247, %v312
      %v329 = vsub.f32 %v248, %v313
      %v330 = vsub.f32 %v249, %v314
      %v331 = vsub.f32 %v250, %v315
      %v332 = vsub.f32 %v251, %v316
      %v333 = vmul.f32 %v317, %v317
      %v334 = vmul.f32 %v318, %v318
      %v335 = vmul.f32 %v319, %v319
      %v336 = vmul.f32 %v320, %v320
      %v337 = vmul.f32 %v321, %v321
      %v338 = vmul.f32 %v322, %v322
      %v339 = vmul.f32 %v323, %v323
      %v340 = vmul.f32 %v324, %v324
      %v341 = vsel %vm252, %v333, 0.0
      %342 = vadd.xlane.f32.xlu0 %v341
      %v343 = vpop.xlane.xlu0 %342
      %v344 = vsel %vm252, %v334, 0.0
      %345 = vadd.xlane.f32.xlu0 %v344
      %v346 = vpop.xlane.xlu0 %345
      %v347 = vsel %vm252, %v335, 0.0
      %348 = vadd.xlane.f32.xlu0 %v347
      %v349 = vpop.xlane.xlu0 %348
      %v350 = vsel %vm252, %v336, 0.0
      %351 = vadd.xlane.f32.xlu0 %v350
      %v352 = vpop.xlane.xlu0 %351
      %v353 = vsel %vm252, %v337, 0.0
      %354 = vadd.xlane.f32.xlu0 %v353
      %v355 = vpop.xlane.xlu0 %354
      %v356 = vsel %vm252, %v338, 0.0
      %357 = vadd.xlane.f32.xlu0 %v356
      %v358 = vpop.xlane.xlu0 %357
      %v359 = vsel %vm252, %v339, 0.0
      %360 = vadd.xlane.f32.xlu0 %v359
      %v361 = vpop.xlane.xlu0 %360
      %v362 = vsel %vm252, %v340, 0.0
      %363 = vadd.xlane.f32.xlu0 %v362
      %v364 = vpop.xlane.xlu0 %363
      %v365 = vmul.f32 %v325, %v325
      %v366 = vmul.f32 %v326, %v326
      %v367 = vmul.f32 %v327, %v327
      %v368 = vmul.f32 %v328, %v328
      %v369 = vmul.f32 %v329, %v329
      %v370 = vmul.f32 %v330, %v330
      %v371 = vmul.f32 %v331, %v331
      %v372 = vmul.f32 %v332, %v332
      %v373 = vsel %vm252, %v365, 0.0
      %374 = vadd.xlane.f32.xlu0 %v373
      %v375 = vpop.xlane.xlu0 %374
      %v376 = vsel %vm252, %v366, 0.0
      %377 = vadd.xlane.f32.xlu0 %v376
      %v378 = vpop.xlane.xlu0 %377
      %v379 = vsel %vm252, %v367, 0.0
      %380 = vadd.xlane.f32.xlu0 %v379
      %v381 = vpop.xlane.xlu0 %380
      %v382 = vsel %vm252, %v368, 0.0
      %383 = vadd.xlane.f32.xlu0 %v382
      %v384 = vpop.xlane.xlu0 %383
      %v385 = vsel %vm252, %v369, 0.0
      %386 = vadd.xlane.f32.xlu0 %v385
      %v387 = vpop.xlane.xlu0 %386
      %v388 = vsel %vm252, %v370, 0.0
      %389 = vadd.xlane.f32.xlu0 %v388
      %v390 = vpop.xlane.xlu0 %389
      %v391 = vsel %vm252, %v371, 0.0
      %392 = vadd.xlane.f32.xlu0 %v391
      %v393 = vpop.xlane.xlu0 %392
      %v394 = vsel %vm252, %v372, 0.0
      %395 = vadd.xlane.f32.xlu0 %v394
      %v396 = vpop.xlane.xlu0 %395
      %v397 = vadd.f32 %v343, %v375
      %v398 = vadd.f32 %v346, %v378
      %v399 = vadd.f32 %v349, %v381
      %v400 = vadd.f32 %v352, %v384
      %v401 = vadd.f32 %v355, %v387
      %v402 = vadd.f32 %v358, %v390
      %v403 = vadd.f32 %v361, %v393
      %v404 = vadd.f32 %v364, %v396
      %v405 = vmul.f32 %v397, 0.0625
      %v406 = vmul.f32 %v398, 0.0625
      %v407 = vmul.f32 %v399, 0.0625
      %v408 = vmul.f32 %v400, 0.0625
      %v409 = vmul.f32 %v401, 0.0625
      %v410 = vmul.f32 %v402, 0.0625
      %v411 = vmul.f32 %v403, 0.0625
      %v412 = vmul.f32 %v404, 0.0625
      %v413 = vadd.f32 %v405, 1e-05
      %v414 = vadd.f32 %v406, 1e-05
      %v415 = vadd.f32 %v407, 1e-05
      %v416 = vadd.f32 %v408, 1e-05
      %v417 = vadd.f32 %v409, 1e-05
      %v418 = vadd.f32 %v410, 1e-05
      %v419 = vadd.f32 %v411, 1e-05
      %v420 = vadd.f32 %v412, 1e-05
      %v421 = vrsqrt.pop %v413
      %v422 = vrsqrt.pop %v414
      %v423 = vrsqrt.pop %v415
      %v424 = vrsqrt.pop %v416
      %v425 = vrsqrt.pop %v417
      %v426 = vrsqrt.pop %v418
      %v427 = vrsqrt.pop %v419
      %v428 = vrsqrt.pop %v420
      %v429 = vmul.f32 %v317, %v421
      %v430 = vmul.f32 %v318, %v422
      %v431 = vmul.f32 %v319, %v423
      %v432 = vmul.f32 %v320, %v424
      %v433 = vmul.f32 %v321, %v425
      %v434 = vmul.f32 %v322, %v426
      %v435 = vmul.f32 %v323, %v427
      %v436 = vmul.f32 %v324, %v428
      %v437 = vmul.f32 %v325, %v421
      %v438 = vmul.f32 %v326, %v422
      %v439 = vmul.f32 %v327, %v423
      %v440 = vmul.f32 %v328, %v424
      %v441 = vmul.f32 %v329, %v425
      %v442 = vmul.f32 %v330, %v426
      %v443 = vmul.f32 %v331, %v427
      %v444 = vmul.f32 %v332, %v428
      %v445 = vld [vmem:[%s1] sm:$0xff]
      %v446 = vld [vmem:[%s2] sm:$0xff]
      %v448 = vsel %vm252, %v437, 0
      %v451 = vsel %vm252, %v438, 0
      %v454 = vsel %vm252, %v439, 0
      %v457 = vsel %vm252, %v440, 0
      %v460 = vsel %vm252, %v441, 0
      %v463 = vsel %vm252, %v442, 0
      %v466 = vsel %vm252, %v443, 0
      %v469 = vsel %vm252, %v444, 0
      %471 = vmatprep.subr.mxu0 0.0
      %472 = vmatpush1.msra.mxu0 %v446
      %473 = vmatprep.subr.mxu0 0.0
      %474 = vmatpush1.msra.mxu0 0.0
      %475 = vmatprep.subr.mxu0 0.0
      %476 = vmatpush1.msra.mxu0 0.0
      %477 = vmatprep.subr.mxu0 0.0
      %478 = vmatpush1.msra.mxu0 0.0
      %479 = vmatprep.subr.mxu0 0.0
      %480 = vmatpush1.msra.mxu0 0.0
      %481 = vmatprep.subr.mxu0 0.0
      %482 = vmatpush1.msra.mxu0 0.0
      %483 = vmatprep.subr.mxu0 0.0
      %484 = vmatpush1.msra.mxu0 0.0
      %485 = vmatprep.subr.mxu0 0.0
      %486 = vmatpush1.msra.mxu0 0.0
      %487 = vmatprep.subr.mxu0 0.0
      %488 = vmatpush1.msra.mxu0 0.0
      %489 = vmatprep.subr.mxu0 0.0
      %490 = vmatpush1.msra.mxu0 0.0
      %491 = vmatprep.subr.mxu0 0.0
      %492 = vmatpush1.msra.mxu0 0.0
      %493 = vmatprep.subr.mxu0 0.0
      %494 = vmatpush1.msra.mxu0 0.0
      %495 = vmatprep.subr.mxu0 0.0
      %496 = vmatpush1.msra.mxu0 0.0
      %497 = vmatprep.subr.mxu0 0.0
      %498 = vmatpush1.msra.mxu0 0.0
      %499 = vmatprep.subr.mxu0 0.0
      %500 = vmatpush1.msra.mxu0 0.0
      %501 = vmatprep.subr.mxu0 0.0
      %502 = vmatpush1.msra.mxu0 0.0
      %503 = vmatprep.subr.mxu0 0.0
      %504 = vmatpush1.msra.mxu0 0.0
      %505 = vmatprep.subr.mxu0 0.0
      %506 = vmatpush1.msra.mxu0 0.0
      %507 = vmatprep.subr.mxu0 0.0
      %508 = vmatpush1.msra.mxu0 0.0
      %509 = vmatprep.subr.mxu0 0.0
      %510 = vmatpush1.msra.mxu0 0.0
      %511 = vmatprep.subr.mxu0 0.0
      %512 = vmatpush1.msra.mxu0 0.0
      %513 = vmatprep.subr.mxu0 0.0
      %514 = vmatpush1.msra.mxu0 0.0
      %515 = vmatprep.subr.mxu0 0.0
      %516 = vmatpush1.msra.mxu0 0.0
      %517 = vmatprep.subr.mxu0 0.0
      %518 = vmatpush1.msra.mxu0 0.0
      %519 = vmatprep.subr.mxu0 0.0
      %520 = vmatpush1.msra.mxu0 0.0
      %521 = vmatprep.subr.mxu0 0.0
      %522 = vmatpush1.msra.mxu0 0.0
      %523 = vmatprep.subr.mxu0 0.0
      %524 = vmatpush1.msra.mxu0 0.0
      %525 = vmatprep.subr.mxu0 0.0
      %526 = vmatpush1.msra.mxu0 0.0
      %527 = vmatprep.subr.mxu0 0.0
      %528 = vmatpush1.msra.mxu0 0.0
      %529 = vmatprep.subr.mxu0 0.0
      %530 = vmatpush1.msra.mxu0 0.0
      %531 = vmatprep.subr.mxu0 0.0
      %532 = vmatpush1.msra.mxu0 0.0
      %533 = vmatprep.subr.mxu0 0.0
      %534 = vmatpush1.msra.mxu0 0.0
      %535 = vmatprep.mubr.f32.mxu0 0.0
      %536 = vmatmul.mubr.f32.gmra.mrb[0].mxu0 %v448
      %v537 = vpop.f32.mrb[0].mxu0
      %v538 = vadd.f32 0.0, %v537
      %v539 = vpop.f32.mrb[0].mxu0
      %540 = vmatprep.mubr.f32.mxu0 0.0
      %541 = vmatmul.mubr.f32.gmra.mrb[0].mxu0 %v451
      %v542 = vpop.f32.mrb[0].mxu0
      %v543 = vadd.f32 0.0, %v542
      %v544 = vpop.f32.mrb[0].mxu0
      %545 = vmatprep.mubr.f32.mxu0 0.0
      %546 = vmatmul.mubr.f32.gmra.mrb[0].mxu0 %v454
      %v547 = vpop.f32.mrb[0].mxu0
      %v548 = vadd.f32 0.0, %v547
      %v549 = vpop.f32.mrb[0].mxu0
      %550 = vmatprep.mubr.f32.mxu0 0.0
      %551 = vmatmul.mubr.f32.gmra.mrb[0].mxu0 %v457
      %v552 = vpop.f32.mrb[0].mxu0
      %v553 = vadd.f32 0.0, %v552
      %v554 = vpop.f32.mrb[0].mxu0
      %555 = vmatprep.mubr.f32.mxu0 0.0
      %556 = vmatmul.mubr.f32.gmra.mrb[0].mxu0 %v460
      %v557 = vpop.f32.mrb[0].mxu0
      %v558 = vadd.f32 0.0, %v557
      %v559 = vpop.f32.mrb[0].mxu0
      %560 = vmatprep.mubr.f32.mxu0 0.0
      %561 = vmatmul.mubr.f32.gmra.mrb[0].mxu0 %v463
      %v562 = vpop.f32.mrb[0].mxu0
      %v563 = vadd.f32 0.0, %v562
      %v564 = vpop.f32.mrb[0].mxu0
      %565 = vmatprep.mubr.f32.mxu0 0.0
      %566 = vmatmul.mubr.f32.gmra.mrb[0].mxu0 %v466
      %v567 = vpop.f32.mrb[0].mxu0
      %v568 = vadd.f32 0.0, %v567
      %v569 = vpop.f32.mrb[0].mxu0
      %570 = vmatprep.mubr.f32.mxu0 0.0
      %571 = vmatmul.mubr.f32.gmra.mrb[0].mxu0 %v469
      %v572 = vpop.f32.mrb[0].mxu0
      %v573 = vadd.f32 0.0, %v572
      %v574 = vpop.f32.mrb[0].mxu0
      %575 = vdwg.mxu0
      %v577 = vsel %vm252, %v429, 0
      %v580 = vsel %vm252, %v430, 0
      %v583 = vsel %vm252, %v431, 0
      %v586 = vsel %vm252, %v432, 0
      %v589 = vsel %vm252, %v433, 0
      %v592 = vsel %vm252, %v434, 0
      %v595 = vsel %vm252, %v435, 0
      %v598 = vsel %vm252, %v436, 0
      %600 = vmatprep.subr.mxu0 0.0
      %601 = vmatpush1.msra.mxu0 %v445
      %602 = vmatprep.subr.mxu0 0.0
      %603 = vmatpush1.msra.mxu0 0.0
      %604 = vmatprep.subr.mxu0 0.0
      %605 = vmatpush1.msra.mxu0 0.0
      %606 = vmatprep.subr.mxu0 0.0
      %607 = vmatpush1.msra.mxu0 0.0
      %608 = vmatprep.subr.mxu0 0.0
      %609 = vmatpush1.msra.mxu0 0.0
      %610 = vmatprep.subr.mxu0 0.0
      %611 = vmatpush1.msra.mxu0 0.0
      %612 = vmatprep.subr.mxu0 0.0
      %613 = vmatpush1.msra.mxu0 0.0
      %614 = vmatprep.subr.mxu0 0.0
      %615 = vmatpush1.msra.mxu0 0.0
      %616 = vmatprep.subr.mxu0 0.0
      %617 = vmatpush1.msra.mxu0 0.0
      %618 = vmatprep.subr.mxu0 0.0
      %619 = vmatpush1.msra.mxu0 0.0
      %620 = vmatprep.subr.mxu0 0.0
      %621 = vmatpush1.msra.mxu0 0.0
      %622 = vmatprep.subr.mxu0 0.0
      %623 = vmatpush1.msra.mxu0 0.0
      %624 = vmatprep.subr.mxu0 0.0
      %625 = vmatpush1.msra.mxu0 0.0
      %626 = vmatprep.subr.mxu0 0.0
      %627 = vmatpush1.msra.mxu0 0.0
      %628 = vmatprep.subr.mxu0 0.0
      %629 = vmatpush1.msra.mxu0 0.0
      %630 = vmatprep.subr.mxu0 0.0
      %631 = vmatpush1.msra.mxu0 0.0
      %632 = vmatprep.subr.mxu0 0.0
      %633 = vmatpush1.msra.mxu0 0.0
      %634 = vmatprep.subr.mxu0 0.0
      %635 = vmatpush1.msra.mxu0 0.0
      %636 = vmatprep.subr.mxu0 0.0
      %637 = vmatpush1.msra.mxu0 0.0
      %638 = vmatprep.subr.mxu0 0.0
      %639 = vmatpush1.msra.mxu0 0.0
      %640 = vmatprep.subr.mxu0 0.0
      %641 = vmatpush1.msra.mxu0 0.0
      %642 = vmatprep.subr.mxu0 0.0
      %643 = vmatpush1.msra.mxu0 0.0
      %644 = vmatprep.subr.mxu0 0.0
      %645 = vmatpush1.msra.mxu0 0.0
      %646 = vmatprep.subr.mxu0 0.0
      %647 = vmatpush1.msra.mxu0 0.0
      %648 = vmatprep.subr.mxu0 0.0
      %649 = vmatpush1.msra.mxu0 0.0
      %650 = vmatprep.subr.mxu0 0.0
      %651 = vmatpush1.msra.mxu0 0.0
      %652 = vmatprep.subr.mxu0 0.0
      %653 = vmatpush1.msra.mxu0 0.0
      %654 = vmatprep.subr.mxu0 0.0
      %655 = vmatpush1.msra.mxu0 0.0
      %656 = vmatprep.subr.mxu0 0.0
      %657 = vmatpush1.msra.mxu0 0.0
      %658 = vmatprep.subr.mxu0 0.0
      %659 = vmatpush1.msra.mxu0 0.0
      %660 = vmatprep.subr.mxu0 0.0
      %661 = vmatpush1.msra.mxu0 0.0
      %662 = vmatprep.subr.mxu0 0.0
      %663 = vmatpush1.msra.mxu0 0.0
      %664 = vmatprep.mubr.f32.mxu0 0.0
      %665 = vmatmul.mubr.f32.gmra.mrb[0].mxu0 %v577
      %v666 = vpop.f32.mrb[0].mxu0
      %v667 = vadd.f32 %v538, %v666
      %v668 = vpop.f32.mrb[0].mxu0
      %669 = vmatprep.mubr.f32.mxu0 0.0
      %670 = vmatmul.mubr.f32.gmra.mrb[0].mxu0 %v580
      %v671 = vpop.f32.mrb[0].mxu0
      %v672 = vadd.f32 %v543, %v671
      %v673 = vpop.f32.mrb[0].mxu0
      %674 = vmatprep.mubr.f32.mxu0 0.0
      %675 = vmatmul.mubr.f32.gmra.mrb[0].mxu0 %v583
      %v676 = vpop.f32.mrb[0].mxu0
      %v677 = vadd.f32 %v548, %v676
      %v678 = vpop.f32.mrb[0].mxu0
      %679 = vmatprep.mubr.f32.mxu0 0.0
      %680 = vmatmul.mubr.f32.gmra.mrb[0].mxu0 %v586
      %v681 = vpop.f32.mrb[0].mxu0
      %v682 = vadd.f32 %v553, %v681
      %v683 = vpop.f32.mrb[0].mxu0
      %684 = vmatprep.mubr.f32.mxu0 0.0
      %685 = vmatmul.mubr.f32.gmra.mrb[0].mxu0 %v589
      %v686 = vpop.f32.mrb[0].mxu0
      %v687 = vadd.f32 %v558, %v686
      %v688 = vpop.f32.mrb[0].mxu0
      %689 = vmatprep.mubr.f32.mxu0 0.0
      %690 = vmatmul.mubr.f32.gmra.mrb[0].mxu0 %v592
      %v691 = vpop.f32.mrb[0].mxu0
      %v692 = vadd.f32 %v563, %v691
      %v693 = vpop.f32.mrb[0].mxu0
      %694 = vmatprep.mubr.f32.mxu0 0.0
      %695 = vmatmul.mubr.f32.gmra.mrb[0].mxu0 %v595
      %v696 = vpop.f32.mrb[0].mxu0
      %v697 = vadd.f32 %v568, %v696
      %v698 = vpop.f32.mrb[0].mxu0
      %699 = vmatprep.mubr.f32.mxu0 0.0
      %700 = vmatmul.mubr.f32.gmra.mrb[0].mxu0 %v598
      %v701 = vpop.f32.mrb[0].mxu0
      %v702 = vadd.f32 %v573, %v701
      %v703 = vpop.f32.mrb[0].mxu0
      %704 = vdwg.mxu0
      %v705 = vld [vmem:[%s3] sm:$0x1]
      %v707 = vlaneseq
      %v708 = vshrl.u32 %v707, 7
      %v709 = vsub.s32 0, %v708
      %v710 = vrot.slane %v705, %v709
      %v712 = vadd.f32 %v667, %v710
      %v713 = vadd.f32 %v672, %v710
      %v714 = vadd.f32 %v677, %v710
      %v715 = vadd.f32 %v682, %v710
      %v716 = vadd.f32 %v687, %v710
      %v717 = vadd.f32 %v692, %v710
      %v718 = vadd.f32 %v697, %v710
      %v719 = vadd.f32 %v702, %v710
      %720 = vst.msk [vmem:[%s233] sm:$0xff] %vm252, %v712
      %721 = vst.msk [vmem:[%s233 + $0x8] sm:$0xff] %vm252, %v713
      %722 = vst.msk [vmem:[%s233 + $0x10] sm:$0xff] %vm252, %v714
      %723 = vst.msk [vmem:[%s233 + $0x18] sm:$0xff] %vm252, %v715
      %724 = vst.msk [vmem:[%s233 + $0x20] sm:$0xff] %vm252, %v716
      %725 = vst.msk [vmem:[%s233 + $0x28] sm:$0xff] %vm252, %v717
      %726 = vst.msk [vmem:[%s233 + $0x30] sm:$0xff] %vm252, %v718
      %727 = vst.msk [vmem:[%s233 + $0x38] sm:$0xff] %vm252, %v719
      %s728 = smul.u32 8, %s19
      %p729 = scmp.lt.s32.totalorder %s728, 15
      %s730 = scalar_select %p729, %s728, 15
      %p731 = scmp.lt.s32.totalorder %s20, 0
      %s732 = scalar_select %p731, %s20, 0
      %s733 = sadd.s32 %s732, %s730
      %s734 = smul.addr %s733, 8
      %s735 = scalar_lea.vmem %s4, %s734
      // Predicated region
      $region37: #{tpu_custom_call.1} parent=35 // pred_check
        %p736 = pneg %p138
      $region38: #{tpu_custom_call.1} parent=35 // pred_check_branch
        %738 = sbr.rel (%p736) target = $region40
      $region39: #{tpu_custom_call.1} parent=35 // pred_region
        %s739 = smul.u32 8, %s19
      $region40: #{tpu_custom_call.1} parent=35 // pred_fallthru
        _
    $region36: #{tpu_custom_call.1} parent=5 // pred_fallthru
      _
    %p740 = scmp.le.s32.totalorder 2, %s10
    // Predicated region
    $region41: #{tpu_custom_call.1} parent=5 // pred_check
      %p741 = pneg %p740
    $region42: #{tpu_custom_call.1} parent=5 // pred_check_branch
      %743 = sbr.rel (%p741) target = $region44
    $region43: #{tpu_custom_call.1} parent=5 // pred_region
      %s744 = ssub.s32 %s10, 2
      // Predicated region
      $region45: #{tpu_custom_call.1} parent=43 // pred_check
        %p745 = pneg %p144
      $region46: #{tpu_custom_call.1} parent=43 // pred_check_branch
        %747 = sbr.rel (%p745) target = $region48
      $region47: #{tpu_custom_call.1} parent=43 // pred_region
        %s748 = smul.u32 8, %s21
        %p749 = scmp.lt.s32.totalorder %s748, 15
        %s750 = scalar_select %p749, %s748, 15
        %p751 = scmp.lt.s32.totalorder %s22, 0
        %s752 = scalar_select %p751, %s22, 0
        %s753 = sadd.s32 %s752, %s750
        %s754 = smul.addr %s753, 8
        %s755 = scalar_lea.vmem %s4, %s754
      $region48: #{tpu_custom_call.1} parent=43 // pred_fallthru
        _
    $region44: #{tpu_custom_call.1} parent=5 // pred_fallthru
      _
  $region6: #{tpu_custom_call.1} parent=0 // loop_footer
    %s14 = sadd.s32 1, %s10
  $region7: #{tpu_custom_call.1} parent=0 // loop_footer_branch
    %9 = sbr.rel target = $region3
  $region8: #{tpu_custom_call.1} parent=0 // loop_exit
    _

</llo_original>
